<compile_context>
chip_gen: v7x
topology: tpu7x:2x2x1
jax: 0.10.0
libtpu: 0.0.40
codegen_flags: <defaults>
</compile_context>

<pallas_src>
import jax
import jax.numpy as jnp
from jax.experimental import pallas as pl
from jax.experimental.pallas import tpu as pltpu

N_ELECTRODES = 7            # DNPU device electrodes
N_DATA_INPUTS = 3           # len(inputs_list[0]) -> x.shape[-1]
N_CONTROLS = N_ELECTRODES - N_DATA_INPUTS
HIDDEN = 32                 # surrogate-model hidden width
ROW_TILE = 4096             # target batch-row tile (review: 2048-4096)
SUBLANE_ALIGN = 16          # bf16 sublane packing


def _round_up(n, m):
    return ((n + m - 1) // m) * m


def dnpu_channels_kernel(x_ref, w1_ref, b1_ref, w2_ref, b2_ref, w3_ref, b3_ref, o_ref):
    """Fused DNPU_Channels tile: every node stacked along the lane axis.

    x_ref  : (tb, n_in)              f32   shared data inputs
    w1_ref : (n_in, n_nodes*H)       f32   per-node effective first layer
    b1_ref : (1, n_nodes*H)          f32   per-node bias (control voltages folded in)
    w2_ref : (n_nodes*H, n_nodes*H)  bf16  block-diagonal kron(I, w2)
    b2_ref : (1, n_nodes*H)          f32
    w3_ref : (n_nodes*H, n_nodes)    bf16  block-diagonal output projection
    b3_ref : (1, n_nodes)            f32
    o_ref  : (tb, n_nodes)           f32   [batch, n_nodes] output tile
    """
    x = x_ref[...]
    w1 = w1_ref[...]

    # Layer 1 on the VPU: K=n_in (=3) broadcast FMAs instead of a wasted MXU pass.
    h = b1_ref[...]                                   # (1, nh), broadcasts over rows
    n_in = x_ref.shape[1]
    for e in range(n_in):                             # static unroll at trace time
        h = h + x[:, e:e + 1] * w1[e:e + 1, :]        # (tb,1)*(1,nh) -> (tb,nh)
    h = jnp.maximum(h, 0.0).astype(jnp.bfloat16)

    # Layers 2 and 3 on the MXU (dense K=N=n_nodes*H for layer 2).
    h = jnp.dot(h, w2_ref[...], preferred_element_type=jnp.float32) + b2_ref[...]
    h = jnp.maximum(h, 0.0).astype(jnp.bfloat16)
    o_ref[...] = jnp.dot(h, w3_ref[...], preferred_element_type=jnp.float32) + b3_ref[...]


def build_effective_params(params, controls, inputs_list, control_indices_list):
    """Fold the electrode merge + shared surrogate layers into stacked operands."""
    w1, b1, w2, b2, w3, b3 = params
    n_nodes = controls.shape[0]
    w1_eff, b1_eff = [], []
    for i in range(n_nodes):
        inp = jnp.asarray(inputs_list[i])
        ctl = jnp.asarray(control_indices_list[i])
        w1_eff.append(w1[inp, :])                                   # (n_data, H)
        b1_eff.append(controls[i][None, :] @ w1[ctl, :] + b1)       # (1, H)
    W1s = jnp.concatenate(w1_eff, axis=1)                           # (n_data, n_nodes*H)
    b1s = jnp.concatenate(b1_eff, axis=1)                           # (1, n_nodes*H)
    eye = jnp.eye(n_nodes, dtype=w2.dtype)
    W2bd = jnp.kron(eye, w2)                                        # (n_nodes*H, n_nodes*H)
    b2s = jnp.tile(b2, (1, n_nodes))                                # (1, n_nodes*H)
    W3bd = jnp.kron(eye, w3)                                        # (n_nodes*H, n_nodes)
    b3s = jnp.tile(b3, (1, n_nodes))                                # (1, n_nodes)
    return W1s, b1s, W2bd, b2s, W3bd, b3s


def _choose_row_tile(batch, row_tile=ROW_TILE):
    """Sublane-aligned batch tile, balanced so padding waste stays small and the
    parallel grid axis has >=2 steps (v7x megacore) whenever batch allows."""
    n_tiles = max(1, pl.cdiv(batch, row_tile))
    if n_tiles == 1 and batch >= 2 * SUBLANE_ALIGN:
        n_tiles = 2                                   # give both v7x TCs work
    tb = _round_up(pl.cdiv(batch, n_tiles), SUBLANE_ALIGN)
    return min(tb, _round_up(batch, SUBLANE_ALIGN))


def _build_call(tb, b_pad, n_in, nh, n_nodes, single_buffer_weights):
    def wspec(shape):
        # Weights/biases are grid-invariant (constant index map); a second
        # pipeline buffer is pure VMEM waste, so request single-buffering.
        if single_buffer_weights:
            return pl.BlockSpec(shape, lambda i: (0, 0), pipeline_mode=pl.Buffered(1))
        return pl.BlockSpec(shape, lambda i: (0, 0))

    return pl.pallas_call(
        dnpu_channels_kernel,
        out_shape=jax.ShapeDtypeStruct((b_pad, n_nodes), jnp.float32),
        grid_spec=pltpu.PrefetchScalarGridSpec(
            num_scalar_prefetch=0,
            grid=(b_pad // tb,),
            in_specs=[
                pl.BlockSpec((tb, n_in), lambda i: (i, 0)),
                wspec((n_in, nh)),
                wspec((1, nh)),
                wspec((nh, nh)),
                wspec((1, nh)),
                wspec((nh, n_nodes)),
                wspec((1, n_nodes)),
            ],
            out_specs=pl.BlockSpec((tb, n_nodes), lambda i: (i, 0)),
        ),
        compiler_params=pltpu.CompilerParams(
            dimension_semantics=("parallel",),
            # <= default on v6e/v7x (never claims v7x's full 64 MiB physical),
            # raises v5e's 16 MiB scoped default for the larger row tile.
            vmem_limit_bytes=32 << 20,
        ),
    )


def run_dnpu_kernel(x, W1s, b1s, W2bd, b2s, W3bd, b3s, row_tile=ROW_TILE):
    batch, n_in = x.shape
    nh = W1s.shape[1]
    n_nodes = W3bd.shape[1]

    tb = _choose_row_tile(batch, row_tile)
    b_pad = _round_up(batch, tb)
    # Padded rows compute ReLU(bias)-driven garbage and are sliced off below.
    x_p = jnp.pad(x, ((0, b_pad - batch), (0, 0))).astype(jnp.float32)

    args = (
        x_p,
        W1s.astype(jnp.float32),     # layer 1 now runs on the VPU -> keep f32
        b1s.astype(jnp.float32),
        W2bd.astype(jnp.bfloat16),
        b2s.astype(jnp.float32),
        W3bd.astype(jnp.bfloat16),
        b3s.astype(jnp.float32),
    )

    out = None
    last_err = None
    for single_buf in (True, False):
        try:
            out = _build_call(tb, b_pad, n_in, nh, n_nodes, single_buf)(*args)
            out = jax.block_until_ready(out)
            break
        except Exception as e:  # pipeline_mode=Buffered(1) unsupported -> fall back
            last_err = e
            out = None
    if out is None:
        raise last_err
    return out[:batch]


def dnpu_channels_forward(x, controls, inputs_list, control_indices_list, params):
    """Mirrors DNPU_Channels.forward: one DNPU node per channel, outputs
    concatenated along dim=1 -> [batch, n_nodes] (emitted directly, no transpose)."""
    assert x.shape[-1] == len(inputs_list[0]), (
        f"size mismatch: data is {x.shape}, DNPU_Channels expecting {len(inputs_list[0])}")
    eff = build_effective_params(params, controls, inputs_list, control_indices_list)
    return run_dnpu_kernel(x, *eff)


def reference_forward(x, controls, inputs_list, control_indices_list, params):
    """Pure-JAX f32 reference of the same computation (for validation)."""
    w1, b1, w2, b2, w3, b3 = params
    batch = x.shape[0]
    outs = []
    for i in range(controls.shape[0]):
        m = jnp.zeros((batch, N_ELECTRODES), x.dtype)
        m = m.at[:, jnp.asarray(inputs_list[i])].set(x)
        m = m.at[:, jnp.asarray(control_indices_list[i])].set(
            jnp.broadcast_to(controls[i], (batch, len(control_indices_list[i]))))
        h = jnp.maximum(m @ w1 + b1, 0.0)
        h = jnp.maximum(h @ w2 + b2, 0.0)
        outs.append(h @ w3 + b3)                 # [batch, 1]
    return jnp.concatenate(outs, axis=1)         # [batch, n_nodes]


if __name__ == "__main__":
    key = jax.random.PRNGKey(0)
    k_x, k_c, k1, k2, k3 = jax.random.split(key, 5)

    batch = 2
    n_nodes = 8

    # Per-node electrode assignments (data electrodes + complementary controls).
    inputs_list = []
    control_indices_list = []
    for i in range(n_nodes):
        data_idx = [1, 2, 3] if i % 2 == 0 else [0, 2, 4]
        ctrl_idx = [e for e in range(N_ELECTRODES) if e not in data_idx]
        inputs_list.append(data_idx)
        control_indices_list.append(ctrl_idx)

    # Deterministic synthetic parameters (surrogate model shared by all nodes,
    # one learnable control-voltage vector per node).
    x = jax.random.uniform(k_x, (batch, N_DATA_INPUTS), jnp.float32, -0.5, 0.5)
    controls = jax.random.uniform(k_c, (n_nodes, N_CONTROLS), jnp.float32, -1.0, 1.0)
    w1 = jax.random.normal(k1, (N_ELECTRODES, HIDDEN), jnp.float32) * 0.3
    b1 = jnp.zeros((1, HIDDEN), jnp.float32)
    w2 = jax.random.normal(k2, (HIDDEN, HIDDEN), jnp.float32) * 0.1
    b2 = jnp.zeros((1, HIDDEN), jnp.float32)
    w3 = jax.random.normal(k3, (HIDDEN, 1), jnp.float32) * 0.1
    b3 = jnp.zeros((1, 1), jnp.float32)
    params = (w1, b1, w2, b2, w3, b3)

    y = dnpu_channels_forward(x, controls, inputs_list, control_indices_list, params)
    y = jax.block_until_ready(y)

    y_ref = reference_forward(x, controls, inputs_list, control_indices_list, params)
    assert y.shape == (batch, n_nodes), y.shape
    # Layers 2/3 run on the bf16 MXU path -> looser tolerance vs the f32 reference.
    assert jnp.allclose(y, y_ref, atol=3e-2, rtol=3e-2), (y, y_ref)

    print("KERNEL_OK")
</pallas_src>

<mosaic_0001>
module attributes {stable_mosaic.version = 11 : i64} {
  func.func @dnpu_channels_kernel(%arg0: i32, %arg1: memref<16x3xf32, #tpu.memory_space<vmem>>, %arg2: memref<3x256xf32, #tpu.memory_space<vmem>>, %arg3: memref<1x256xf32, #tpu.memory_space<vmem>>, %arg4: memref<256x256xbf16, #tpu.memory_space<vmem>>, %arg5: memref<1x256xf32, #tpu.memory_space<vmem>>, %arg6: memref<256x8xbf16, #tpu.memory_space<vmem>>, %arg7: memref<1x8xf32, #tpu.memory_space<vmem>>, %arg8: memref<16x8xf32, #tpu.memory_space<vmem>>) attributes {dimension_semantics = [#tpu.dimension_semantics<parallel>], iteration_bounds = array<i64: 1>, scalar_prefetch = 0 : i64, scratch_operands = 0 : i64, tpu.core_type = #tpu.core_type<tc>, window_params = [{transform_indices = @transform_0, window_bounds = array<i64: 16, 3>}, {pipeline_mode = #tpu.pipeline_mode<synchronous>, transform_indices = @transform_1, window_bounds = array<i64: 3, 256>}, {pipeline_mode = #tpu.pipeline_mode<synchronous>, transform_indices = @transform_2, window_bounds = array<i64: 1, 256>}, {pipeline_mode = #tpu.pipeline_mode<synchronous>, transform_indices = @transform_3, window_bounds = array<i64: 256, 256>}, {pipeline_mode = #tpu.pipeline_mode<synchronous>, transform_indices = @transform_4, window_bounds = array<i64: 1, 256>}, {pipeline_mode = #tpu.pipeline_mode<synchronous>, transform_indices = @transform_5, window_bounds = array<i64: 256, 8>}, {pipeline_mode = #tpu.pipeline_mode<synchronous>, transform_indices = @transform_6, window_bounds = array<i64: 1, 8>}, {transform_indices = @transform_7, window_bounds = array<i64: 16, 8>}]} {
    %c0 = arith.constant 0 : index
    %c0_0 = arith.constant 0 : index
    %0 = vector.load %arg1[%c0, %c0_0] : memref<16x3xf32, #tpu.memory_space<vmem>>, vector<16x3xf32>
    %c0_1 = arith.constant 0 : index
    %c0_2 = arith.constant 0 : index
    %1 = vector.load %arg2[%c0_1, %c0_2] : memref<3x256xf32, #tpu.memory_space<vmem>>, vector<3x256xf32>
    %c0_3 = arith.constant 0 : index
    %c0_4 = arith.constant 0 : index
    %2 = vector.load %arg3[%c0_3, %c0_4] : memref<1x256xf32, #tpu.memory_space<vmem>>, vector<1x256xf32>
    %3 = vector.extract_strided_slice %0 {offsets = [0, 0], sizes = [16, 1], strides = [1, 1]} : vector<16x3xf32> to vector<16x1xf32>
    %4 = vector.extract_strided_slice %1 {offsets = [0, 0], sizes = [1, 256], strides = [1, 1]} : vector<3x256xf32> to vector<1x256xf32>
    %5 = vector.broadcast %3 : vector<16x1xf32> to vector<16x256xf32>
    %6 = vector.broadcast %4 : vector<1x256xf32> to vector<16x256xf32>
    %7 = arith.mulf %5, %6 : vector<16x256xf32>
    %8 = vector.broadcast %2 : vector<1x256xf32> to vector<16x256xf32>
    %9 = arith.addf %8, %7 : vector<16x256xf32>
    %10 = vector.extract_strided_slice %0 {offsets = [0, 1], sizes = [16, 1], strides = [1, 1]} : vector<16x3xf32> to vector<16x1xf32>
    %11 = vector.extract_strided_slice %1 {offsets = [1, 0], sizes = [1, 256], strides = [1, 1]} : vector<3x256xf32> to vector<1x256xf32>
    %12 = vector.broadcast %10 : vector<16x1xf32> to vector<16x256xf32>
    %13 = vector.broadcast %11 : vector<1x256xf32> to vector<16x256xf32>
    %14 = arith.mulf %12, %13 : vector<16x256xf32>
    %15 = arith.addf %9, %14 : vector<16x256xf32>
    %16 = vector.extract_strided_slice %0 {offsets = [0, 2], sizes = [16, 1], strides = [1, 1]} : vector<16x3xf32> to vector<16x1xf32>
    %17 = vector.extract_strided_slice %1 {offsets = [2, 0], sizes = [1, 256], strides = [1, 1]} : vector<3x256xf32> to vector<1x256xf32>
    %18 = vector.broadcast %16 : vector<16x1xf32> to vector<16x256xf32>
    %19 = vector.broadcast %17 : vector<1x256xf32> to vector<16x256xf32>
    %20 = arith.mulf %18, %19 : vector<16x256xf32>
    %21 = arith.addf %15, %20 : vector<16x256xf32>
    %cst = arith.constant 0.000000e+00 : f32
    %22 = vector.broadcast %cst : f32 to vector<16x256xf32>
    %23 = arith.maximumf %21, %22 : vector<16x256xf32>
    %24 = arith.truncf %23 : vector<16x256xf32> to vector<16x256xbf16>
    %c0_5 = arith.constant 0 : index
    %c0_6 = arith.constant 0 : index
    %25 = vector.load %arg4[%c0_5, %c0_6] : memref<256x256xbf16, #tpu.memory_space<vmem>>, vector<256x256xbf16>
    %cst_7 = arith.constant dense<0.000000e+00> : vector<16x256xf32>
    %26 = tpu.matmul %24, %25, %cst_7 {dimension_numbers = #tpu.dot_dimension_numbers<[1], [0], [0], [1], [0, 0, 1, 1], [], []>} : vector<16x256xbf16>, vector<256x256xbf16>, vector<16x256xf32> -> vector<16x256xf32>
    %c0_8 = arith.constant 0 : index
    %c0_9 = arith.constant 0 : index
    %27 = vector.load %arg5[%c0_8, %c0_9] : memref<1x256xf32, #tpu.memory_space<vmem>>, vector<1x256xf32>
    %28 = vector.broadcast %27 : vector<1x256xf32> to vector<16x256xf32>
    %29 = arith.addf %26, %28 : vector<16x256xf32>
    %cst_10 = arith.constant 0.000000e+00 : f32
    %30 = vector.broadcast %cst_10 : f32 to vector<16x256xf32>
    %31 = arith.maximumf %29, %30 : vector<16x256xf32>
    %32 = arith.truncf %31 : vector<16x256xf32> to vector<16x256xbf16>
    %c0_11 = arith.constant 0 : index
    %c0_12 = arith.constant 0 : index
    %33 = vector.load %arg6[%c0_11, %c0_12] : memref<256x8xbf16, #tpu.memory_space<vmem>>, vector<256x8xbf16>
    %cst_13 = arith.constant dense<0.000000e+00> : vector<16x8xf32>
    %34 = tpu.matmul %32, %33, %cst_13 {dimension_numbers = #tpu.dot_dimension_numbers<[1], [0], [0], [1], [0, 0, 1, 1], [], []>} : vector<16x256xbf16>, vector<256x8xbf16>, vector<16x8xf32> -> vector<16x8xf32>
    %c0_14 = arith.constant 0 : index
    %c0_15 = arith.constant 0 : index
    %35 = vector.load %arg7[%c0_14, %c0_15] : memref<1x8xf32, #tpu.memory_space<vmem>>, vector<1x8xf32>
    %36 = vector.broadcast %35 : vector<1x8xf32> to vector<16x8xf32>
    %37 = arith.addf %34, %36 : vector<16x8xf32>
    %c0_16 = arith.constant 0 : index
    %c0_17 = arith.constant 0 : index
    %38 = vector.load %arg8[%c0_16, %c0_17] : memref<16x8xf32, #tpu.memory_space<vmem>>, vector<16x8xf32>
    tpu.vector_store %arg8[%c0_16, %c0_17], %37 {strides = array<i32>} : memref<16x8xf32, #tpu.memory_space<vmem>>, vector<16x8xf32>,
    return
  }
  func.func @transform_0(%arg0: i32) -> (i32, i32) {
    %c0_i32 = arith.constant 0 : i32
    %c0_i32_0 = arith.constant 0 : i32
    return %arg0, %c0_i32 : i32, i32
  }
  func.func @transform_1(%arg0: i32) -> (i32, i32) {
    %c0_i32 = arith.constant 0 : i32
    %c0_i32_0 = arith.constant 0 : i32
    %c0_i32_1 = arith.constant 0 : i32
    return %c0_i32, %c0_i32_0 : i32, i32
  }
  func.func @transform_2(%arg0: i32) -> (i32, i32) {
    %c0_i32 = arith.constant 0 : i32
    %c0_i32_0 = arith.constant 0 : i32
    %c0_i32_1 = arith.constant 0 : i32
    return %c0_i32, %c0_i32_0 : i32, i32
  }
  func.func @transform_3(%arg0: i32) -> (i32, i32) {
    %c0_i32 = arith.constant 0 : i32
    %c0_i32_0 = arith.constant 0 : i32
    %c0_i32_1 = arith.constant 0 : i32
    return %c0_i32, %c0_i32_0 : i32, i32
  }
  func.func @transform_4(%arg0: i32) -> (i32, i32) {
    %c0_i32 = arith.constant 0 : i32
    %c0_i32_0 = arith.constant 0 : i32
    %c0_i32_1 = arith.constant 0 : i32
    return %c0_i32, %c0_i32_0 : i32, i32
  }
  func.func @transform_5(%arg0: i32) -> (i32, i32) {
    %c0_i32 = arith.constant 0 : i32
    %c0_i32_0 = arith.constant 0 : i32
    %c0_i32_1 = arith.constant 0 : i32
    return %c0_i32, %c0_i32_0 : i32, i32
  }
  func.func @transform_6(%arg0: i32) -> (i32, i32) {
    %c0_i32 = arith.constant 0 : i32
    %c0_i32_0 = arith.constant 0 : i32
    %c0_i32_1 = arith.constant 0 : i32
    return %c0_i32, %c0_i32_0 : i32, i32
  }
  func.func @transform_7(%arg0: i32) -> (i32, i32) {
    %c0_i32 = arith.constant 0 : i32
    %c0_i32_0 = arith.constant 0 : i32
    return %arg0, %c0_i32 : i32, i32
  }
}

module attributes {stable_mosaic.version = 11 : i64} {
  func.func @dnpu_channels_kernel(%arg0: i32, %arg1: memref<16x3xf32, #tpu.memory_space<vmem>>, %arg2: memref<3x256xf32, #tpu.memory_space<vmem>>, %arg3: memref<1x256xf32, #tpu.memory_space<vmem>>, %arg4: memref<256x256xbf16, #tpu.memory_space<vmem>>, %arg5: memref<1x256xf32, #tpu.memory_space<vmem>>, %arg6: memref<256x8xbf16, #tpu.memory_space<vmem>>, %arg7: memref<1x8xf32, #tpu.memory_space<vmem>>, %arg8: memref<16x8xf32, #tpu.memory_space<vmem>>) attributes {dimension_semantics = [#tpu.dimension_semantics<parallel>], iteration_bounds = array<i64: 1>, scalar_prefetch = 0 : i64, scratch_operands = 0 : i64, tpu.core_type = #tpu.core_type<tc>, window_params = [{transform_indices = @transform_0, window_bounds = array<i64: 16, 3>}, {pipeline_mode = #tpu.pipeline_mode<synchronous>, transform_indices = @transform_1, window_bounds = array<i64: 3, 256>}, {pipeline_mode = #tpu.pipeline_mode<synchronous>, transform_indices = @transform_2, window_bounds = array<i64: 1, 256>}, {pipeline_mode = #tpu.pipeline_mode<synchronous>, transform_indices = @transform_3, window_bounds = array<i64: 256, 256>}, {pipeline_mode = #tpu.pipeline_mode<synchronous>, transform_indices = @transform_4, window_bounds = array<i64: 1, 256>}, {pipeline_mode = #tpu.pipeline_mode<synchronous>, transform_indices = @transform_5, window_bounds = array<i64: 256, 8>}, {pipeline_mode = #tpu.pipeline_mode<synchronous>, transform_indices = @transform_6, window_bounds = array<i64: 1, 8>}, {transform_indices = @transform_7, window_bounds = array<i64: 16, 8>}]} {
    %c0 = arith.constant 0 : index
    %c0_0 = arith.constant 0 : index
    %0 = vector.load %arg1[%c0, %c0_0] : memref<16x3xf32, #tpu.memory_space<vmem>>, vector<16x3xf32>
    %c0_1 = arith.constant 0 : index
    %c0_2 = arith.constant 0 : index
    %1 = vector.load %arg2[%c0_1, %c0_2] : memref<3x256xf32, #tpu.memory_space<vmem>>, vector<3x256xf32>
    %c0_3 = arith.constant 0 : index
    %c0_4 = arith.constant 0 : index
    %2 = vector.load %arg3[%c0_3, %c0_4] : memref<1x256xf32, #tpu.memory_space<vmem>>, vector<1x256xf32>
    %3 = vector.extract_strided_slice %0 {offsets = [0, 0], sizes = [16, 1], strides = [1, 1]} : vector<16x3xf32> to vector<16x1xf32>
    %4 = vector.extract_strided_slice %1 {offsets = [0, 0], sizes = [1, 256], strides = [1, 1]} : vector<3x256xf32> to vector<1x256xf32>
    %5 = vector.broadcast %3 : vector<16x1xf32> to vector<16x256xf32>
    %6 = vector.broadcast %4 : vector<1x256xf32> to vector<16x256xf32>
    %7 = arith.mulf %5, %6 : vector<16x256xf32>
    %8 = vector.broadcast %2 : vector<1x256xf32> to vector<16x256xf32>
    %9 = arith.addf %8, %7 : vector<16x256xf32>
    %10 = vector.extract_strided_slice %0 {offsets = [0, 1], sizes = [16, 1], strides = [1, 1]} : vector<16x3xf32> to vector<16x1xf32>
    %11 = vector.extract_strided_slice %1 {offsets = [1, 0], sizes = [1, 256], strides = [1, 1]} : vector<3x256xf32> to vector<1x256xf32>
    %12 = vector.broadcast %10 : vector<16x1xf32> to vector<16x256xf32>
    %13 = vector.broadcast %11 : vector<1x256xf32> to vector<16x256xf32>
    %14 = arith.mulf %12, %13 : vector<16x256xf32>
    %15 = arith.addf %9, %14 : vector<16x256xf32>
    %16 = vector.extract_strided_slice %0 {offsets = [0, 2], sizes = [16, 1], strides = [1, 1]} : vector<16x3xf32> to vector<16x1xf32>
    %17 = vector.extract_strided_slice %1 {offsets = [2, 0], sizes = [1, 256], strides = [1, 1]} : vector<3x256xf32> to vector<1x256xf32>
    %18 = vector.broadcast %16 : vector<16x1xf32> to vector<16x256xf32>
    %19 = vector.broadcast %17 : vector<1x256xf32> to vector<16x256xf32>
    %20 = arith.mulf %18, %19 : vector<16x256xf32>
    %21 = arith.addf %15, %20 : vector<16x256xf32>
    %cst = arith.constant 0.000000e+00 : f32
    %22 = vector.broadcast %cst : f32 to vector<16x256xf32>
    %23 = arith.maximumf %21, %22 : vector<16x256xf32>
    %24 = arith.truncf %23 : vector<16x256xf32> to vector<16x256xbf16>
    %c0_5 = arith.constant 0 : index
    %c0_6 = arith.constant 0 : index
    %25 = vector.load %arg4[%c0_5, %c0_6] : memref<256x256xbf16, #tpu.memory_space<vmem>>, vector<256x256xbf16>
    %cst_7 = arith.constant dense<0.000000e+00> : vector<16x256xf32>
    %26 = tpu.matmul %24, %25, %cst_7 {dimension_numbers = #tpu.dot_dimension_numbers<[1], [0], [0], [1], [0, 0, 1, 1], [], []>} : vector<16x256xbf16>, vector<256x256xbf16>, vector<16x256xf32> -> vector<16x256xf32>
    %c0_8 = arith.constant 0 : index
    %c0_9 = arith.constant 0 : index
    %27 = vector.load %arg5[%c0_8, %c0_9] : memref<1x256xf32, #tpu.memory_space<vmem>>, vector<1x256xf32>
    %28 = vector.broadcast %27 : vector<1x256xf32> to vector<16x256xf32>
    %29 = arith.addf %26, %28 : vector<16x256xf32>
    %cst_10 = arith.constant 0.000000e+00 : f32
    %30 = vector.broadcast %cst_10 : f32 to vector<16x256xf32>
    %31 = arith.maximumf %29, %30 : vector<16x256xf32>
    %32 = arith.truncf %31 : vector<16x256xf32> to vector<16x256xbf16>
    %c0_11 = arith.constant 0 : index
    %c0_12 = arith.constant 0 : index
    %33 = vector.load %arg6[%c0_11, %c0_12] : memref<256x8xbf16, #tpu.memory_space<vmem>>, vector<256x8xbf16>
    %cst_13 = arith.constant dense<0.000000e+00> : vector<16x8xf32>
    %34 = tpu.matmul %32, %33, %cst_13 {dimension_numbers = #tpu.dot_dimension_numbers<[1], [0], [0], [1], [0, 0, 1, 1], [], []>} : vector<16x256xbf16>, vector<256x8xbf16>, vector<16x8xf32> -> vector<16x8xf32>
    %c0_14 = arith.constant 0 : index
    %c0_15 = arith.constant 0 : index
    %35 = vector.load %arg7[%c0_14, %c0_15] : memref<1x8xf32, #tpu.memory_space<vmem>>, vector<1x8xf32>
    %36 = vector.broadcast %35 : vector<1x8xf32> to vector<16x8xf32>
    %37 = arith.addf %34, %36 : vector<16x8xf32>
    %c0_16 = arith.constant 0 : index
    %c0_17 = arith.constant 0 : index
    %38 = vector.load %arg8[%c0_16, %c0_17] : memref<16x8xf32, #tpu.memory_space<vmem>>, vector<16x8xf32>
    tpu.vector_store %arg8[%c0_16, %c0_17], %37 {strides = array<i32>} : memref<16x8xf32, #tpu.memory_space<vmem>>, vector<16x8xf32>,
    return
  }
  func.func @transform_0(%arg0: i32) -> (i32, i32) {
    %c0_i32 = arith.constant 0 : i32
    %c0_i32_0 = arith.constant 0 : i32
    return %arg0, %c0_i32 : i32, i32
  }
  func.func @transform_1(%arg0: i32) -> (i32, i32) {
    %c0_i32 = arith.constant 0 : i32
    %c0_i32_0 = arith.constant 0 : i32
    %c0_i32_1 = arith.constant 0 : i32
    return %c0_i32, %c0_i32_0 : i32, i32
  }
  func.func @transform_2(%arg0: i32) -> (i32, i32) {
    %c0_i32 = arith.constant 0 : i32
    %c0_i32_0 = arith.constant 0 : i32
    %c0_i32_1 = arith.constant 0 : i32
    return %c0_i32, %c0_i32_0 : i32, i32
  }
  func.func @transform_3(%arg0: i32) -> (i32, i32) {
    %c0_i32 = arith.constant 0 : i32
    %c0_i32_0 = arith.constant 0 : i32
    %c0_i32_1 = arith.constant 0 : i32
    return %c0_i32, %c0_i32_0 : i32, i32
  }
  func.func @transform_4(%arg0: i32) -> (i32, i32) {
    %c0_i32 = arith.constant 0 : i32
    %c0_i32_0 = arith.constant 0 : i32
    %c0_i32_1 = arith.constant 0 : i32
    return %c0_i32, %c0_i32_0 : i32, i32
  }
  func.func @transform_5(%arg0: i32) -> (i32, i32) {
    %c0_i32 = arith.constant 0 : i32
    %c0_i32_0 = arith.constant 0 : i32
    %c0_i32_1 = arith.constant 0 : i32
    return %c0_i32, %c0_i32_0 : i32, i32
  }
  func.func @transform_6(%arg0: i32) -> (i32, i32) {
    %c0_i32 = arith.constant 0 : i32
    %c0_i32_0 = arith.constant 0 : i32
    %c0_i32_1 = arith.constant 0 : i32
    return %c0_i32, %c0_i32_0 : i32, i32
  }
  func.func @transform_7(%arg0: i32) -> (i32, i32) {
    %c0_i32 = arith.constant 0 : i32
    %c0_i32_0 = arith.constant 0 : i32
    return %arg0, %c0_i32 : i32, i32
  }
}

</mosaic_0001>

<llo_original>
// kernel: tpu_custom_call.1
$region0: #{tpu_custom_call.1}
  #allocation0 [shape = 'u32[]', space=smem, size = 0x4, offset = 0x4, fixed_abs, tag = 'smem constant byte address 0x4 - core index']
  #allocation1 [shape = 'u32[144,128]{1,0:T(1,128)}', space=vmem, size = 0x12000, scoped, tag = 'internal scratch']
  %s0 = inlined_call_operand.vmem [shape: f32[16,3], index: 0, kind: input, shape index: {}]
  %s1 = inlined_call_operand.vmem [shape: f32[3,256], index: 1, kind: input, shape index: {}]
  %s2 = inlined_call_operand.vmem [shape: f32[1,256], index: 2, kind: input, shape index: {}]
  %s3 = inlined_call_operand.hbm [shape: bf16[256,256], index: 3, kind: input, shape index: {}]
  %s4 = inlined_call_operand.vmem [shape: f32[1,256], index: 4, kind: input, shape index: {}]
  %s5 = inlined_call_operand.vmem [shape: bf16[256,8], index: 5, kind: input, shape index: {}]
  %s6 = inlined_call_operand.vmem [shape: f32[1,8], index: 6, kind: input, shape index: {}]
  %s7 = inlined_call_operand.vmem [shape: f32[16,8], index: 7, kind: output, shape index: {}]
  %s8 = sld [smem:[#allocation0]]
  $region42: #{tpu_custom_call.1} parent=0
    _
  %s10 = ssub.s32 1, %s8
  %s11 = scalar_select 0, %s10, %s8
  $region1: #{tpu_custom_call.1} parent=0
    #allocation2 [shape = 'u8[131072]{0}', space=vmem, size = 0x20000, scoped, tag = 'input window, operand 3, single buffered']
    #allocation3 [shape = 's32[1]{0}', space=sflag, size = 0x4, scoped, tag = 'scoped memory for tpu_custom_call.1']
    %12 = vsyncpa [#allocation3], 0
    // Predicated region
    $region2: #{tpu_custom_call.1} parent=1 // pred_check
      _
    $region3: #{tpu_custom_call.1} parent=1 // pred_check_branch
      %14 = sbr.rel (0) target = $region5
    $region4: #{tpu_custom_call.1} parent=1 // pred_region
      _
    $region5: #{tpu_custom_call.1} parent=1 // pred_fallthru
      _
    // Predicated region
    $region6: #{tpu_custom_call.1} parent=1 // pred_check
      _
    $region7: #{tpu_custom_call.1} parent=1 // pred_check_branch
      %16 = sbr.rel (0) target = $region9
    $region8: #{tpu_custom_call.1} parent=1 // pred_region
      _
    $region9: #{tpu_custom_call.1} parent=1 // pred_fallthru
      _
    // Predicated region
    $region10: #{tpu_custom_call.1} parent=1 // pred_check
      _
    $region11: #{tpu_custom_call.1} parent=1 // pred_check_branch
      %18 = sbr.rel (0) target = $region13
    $region12: #{tpu_custom_call.1} parent=1 // pred_region
      _
    $region13: #{tpu_custom_call.1} parent=1 // pred_fallthru
      _
    // Predicated region
    $region14: #{tpu_custom_call.1} parent=1 // pred_check
      _
    $region15: #{tpu_custom_call.1} parent=1 // pred_check_branch
      %20 = sbr.rel (0) target = $region17
    $region16: #{tpu_custom_call.1} parent=1 // pred_region
      %s22 = ssub.s32 4096, 4096
      %23 = vsyncadd [#allocation3], %s22
      %s24 = sshll.u32 [#allocation2], 4
      %s25 = int_to_ptr.vmem [resolvable:$true] %s24
      %30 = dma.hbm_to_vmem [thread:$0]  %s3, 4096, %s25, [#allocation3], 128, 128, 8
    $region17: #{tpu_custom_call.1} parent=1 // pred_fallthru
      _
    // Predicated region
    $region18: #{tpu_custom_call.1} parent=1 // pred_check
      _
    $region19: #{tpu_custom_call.1} parent=1 // pred_check_branch
      %32 = sbr.rel (0) target = $region21
    $region20: #{tpu_custom_call.1} parent=1 // pred_region
      _
    $region21: #{tpu_custom_call.1} parent=1 // pred_fallthru
      _
    // Predicated region
    $region22: #{tpu_custom_call.1} parent=1 // pred_check
      _
    $region23: #{tpu_custom_call.1} parent=1 // pred_check_branch
      %34 = sbr.rel (0) target = $region25
    $region24: #{tpu_custom_call.1} parent=1 // pred_region
      _
    $region25: #{tpu_custom_call.1} parent=1 // pred_fallthru
      _
    // Predicated region
    $region26: #{tpu_custom_call.1} parent=1 // pred_check
      _
    $region27: #{tpu_custom_call.1} parent=1 // pred_check_branch
      %36 = sbr.rel (0) target = $region29
    $region28: #{tpu_custom_call.1} parent=1 // pred_region
      _
    $region29: #{tpu_custom_call.1} parent=1 // pred_fallthru
      _
    // Predicated region
    $region30: #{tpu_custom_call.1} parent=1 // pred_check
      _
    $region31: #{tpu_custom_call.1} parent=1 // pred_check_branch
      %38 = sbr.rel (0) target = $region33
    $region32: #{tpu_custom_call.1} parent=1 // pred_region
      %39 = dma.done [#allocation3], 4096
    $region33: #{tpu_custom_call.1} parent=1 // pred_fallthru
      _
    %v41 = vld [vmem:[%s0] sm:$0xff]
    %v42 = vld [vmem:[%s0 + $0x8] sm:$0xff]
    %v43 = vld [vmem:[%s1] sm:$0x77]
    %v44 = vld [vmem:[%s2] sm:$0x3]
    %46 = vset.pattern.permute.xlu0 0
    %47 = vperm.xlu0 %46, %v41
    %v48 = vpop.permute.xlu0 %47
    %51 = vset.pattern.permute.xlu0 0
    %52 = vperm.xlu0 %51, %v42
    %v53 = vpop.permute.xlu0 %52
    %v56 = vlaneseq
    %v57 = vshrl.u32 %v56, 7
    %v58 = vsub.s32 0, %v57
    %v59 = vrot.slane %v43, %v58
    %v60 = vlaneseq
    %v61 = vshrl.u32 %v60, 7
    %v62 = vsub.s32 4, %v61
    %v63 = vrot.slane %v43, %v62
    %v66 = vlaneseq
    %v67 = vshrl.u32 %v66, 7
    %v68 = vsub.s32 0, %v67
    %v69 = vrot.slane %v59, %v68
    %v70 = vlaneseq
    %v71 = vshrl.u32 %v70, 7
    %v72 = vsub.s32 0, %v71
    %v73 = vrot.slane %v63, %v72
    %v74 = vmul.f32 %v48, %v69
    %v75 = vmul.f32 %v48, %v73
    %v76 = vmul.f32 %v53, %v69
    %v77 = vmul.f32 %v53, %v73
    %v79 = vlaneseq
    %v80 = vshrl.u32 %v79, 7
    %v81 = vsub.s32 0, %v80
    %v82 = vrot.slane %v44, %v81
    %v83 = vlaneseq
    %v84 = vshrl.u32 %v83, 7
    %v85 = vsub.s32 1, %v84
    %v86 = vrot.slane %v44, %v85
    %v89 = vadd.f32 %v82, %v74
    %v90 = vadd.f32 %v86, %v75
    %v91 = vadd.f32 %v82, %v76
    %v92 = vadd.f32 %v86, %v77
    %93 = vset.pattern.permute.xlu0 1
    %94 = vperm.xlu0 %93, %v41
    %v95 = vpop.permute.xlu0 %94
    %97 = vset.pattern.permute.xlu0 1
    %98 = vperm.xlu0 %97, %v42
    %v99 = vpop.permute.xlu0 %98
    %v101 = vlaneseq
    %v102 = vshrl.u32 %v101, 7
    %v103 = vsub.s32 1, %v102
    %v104 = vrot.slane %v43, %v103
    %v105 = vlaneseq
    %v106 = vshrl.u32 %v105, 7
    %v107 = vsub.s32 5, %v106
    %v108 = vrot.slane %v43, %v107
    %v111 = vlaneseq
    %v112 = vshrl.u32 %v111, 7
    %v113 = vsub.s32 1, %v112
    %v114 = vrot.slane %v104, %v113
    %v115 = vlaneseq
    %v116 = vshrl.u32 %v115, 7
    %v117 = vsub.s32 1, %v116
    %v118 = vrot.slane %v108, %v117
    %v119 = vmul.f32 %v95, %v114
    %v120 = vmul.f32 %v95, %v118
    %v121 = vmul.f32 %v99, %v114
    %v122 = vmul.f32 %v99, %v118
    %v123 = vadd.f32 %v89, %v119
    %v124 = vadd.f32 %v90, %v120
    %v125 = vadd.f32 %v91, %v121
    %v126 = vadd.f32 %v92, %v122
    %127 = vset.pattern.permute.xlu0 2
    %128 = vperm.xlu0 %127, %v41
    %v129 = vpop.permute.xlu0 %128
    %131 = vset.pattern.permute.xlu0 2
    %132 = vperm.xlu0 %131, %v42
    %v133 = vpop.permute.xlu0 %132
    %v135 = vlaneseq
    %v136 = vshrl.u32 %v135, 7
    %v137 = vsub.s32 2, %v136
    %v138 = vrot.slane %v43, %v137
    %v139 = vlaneseq
    %v140 = vshrl.u32 %v139, 7
    %v141 = vsub.s32 6, %v140
    %v142 = vrot.slane %v43, %v141
    %v145 = vlaneseq
    %v146 = vshrl.u32 %v145, 7
    %v147 = vsub.s32 2, %v146
    %v148 = vrot.slane %v138, %v147
    %v149 = vlaneseq
    %v150 = vshrl.u32 %v149, 7
    %v151 = vsub.s32 2, %v150
    %v152 = vrot.slane %v142, %v151
    %v153 = vmul.f32 %v129, %v148
    %v154 = vmul.f32 %v129, %v152
    %v155 = vmul.f32 %v133, %v148
    %v156 = vmul.f32 %v133, %v152
    %v157 = vadd.f32 %v123, %v153
    %v158 = vadd.f32 %v124, %v154
    %v159 = vadd.f32 %v125, %v155
    %v160 = vadd.f32 %v126, %v156
    %v161 = vmax.f32 %v157, 0.0
    %v162 = vmax.f32 %v158, 0.0
    %v163 = vmax.f32 %v159, 0.0
    %v164 = vmax.f32 %v160, 0.0
    %v165 = vpack.c.bf16 %v163, %v161
    %v166 = vpack.c.bf16 %v164, %v162
    %v167 = vld [vmem:[#allocation2] sm:$0xff]
    %v168 = vld [vmem:[#allocation2 + $0x8] sm:$0xff]
    %v169 = vld [vmem:[#allocation2 + $0x10] sm:$0xff]
    %v170 = vld [vmem:[#allocation2 + $0x18] sm:$0xff]
    %v171 = vld [vmem:[#allocation2 + $0x20] sm:$0xff]
    %v172 = vld [vmem:[#allocation2 + $0x28] sm:$0xff]
    %v173 = vld [vmem:[#allocation2 + $0x30] sm:$0xff]
    %v174 = vld [vmem:[#allocation2 + $0x38] sm:$0xff]
    %v175 = vld [vmem:[#allocation2 + $0x40] sm:$0xff]
    %v176 = vld [vmem:[#allocation2 + $0x48] sm:$0xff]
    %v177 = vld [vmem:[#allocation2 + $0x50] sm:$0xff]
    %v178 = vld [vmem:[#allocation2 + $0x58] sm:$0xff]
    %v179 = vld [vmem:[#allocation2 + $0x60] sm:$0xff]
    %v180 = vld [vmem:[#allocation2 + $0x68] sm:$0xff]
    %v181 = vld [vmem:[#allocation2 + $0x70] sm:$0xff]
    %v182 = vld [vmem:[#allocation2 + $0x78] sm:$0xff]
    %v183 = vld [vmem:[#allocation2 + $0x80] sm:$0xff]
    %v184 = vld [vmem:[#allocation2 + $0x88] sm:$0xff]
    %v185 = vld [vmem:[#allocation2 + $0x90] sm:$0xff]
    %v186 = vld [vmem:[#allocation2 + $0x98] sm:$0xff]
    %v187 = vld [vmem:[#allocation2 + $0xa0] sm:$0xff]
    %v188 = vld [vmem:[#allocation2 + $0xa8] sm:$0xff]
    %v189 = vld [vmem:[#allocation2 + $0xb0] sm:$0xff]
    %v190 = vld [vmem:[#allocation2 + $0xb8] sm:$0xff]
    %v191 = vld [vmem:[#allocation2 + $0xc0] sm:$0xff]
    %v192 = vld [vmem:[#allocation2 + $0xc8] sm:$0xff]
    %v193 = vld [vmem:[#allocation2 + $0xd0] sm:$0xff]
    %v194 = vld [vmem:[#allocation2 + $0xd8] sm:$0xff]
    %v195 = vld [vmem:[#allocation2 + $0xe0] sm:$0xff]
    %v196 = vld [vmem:[#allocation2 + $0xe8] sm:$0xff]
    %v197 = vld [vmem:[#allocation2 + $0xf0] sm:$0xff]
    %v198 = vld [vmem:[#allocation2 + $0xf8] sm:$0xff]
    %v199 = vld [vmem:[%s4] sm:$0x3]
    %v201 = vlaneseq
    %v202 = vshrl.u32 %v201, 7
    %v203 = vsub.s32 0, %v202
    %v204 = vrot.slane %v199, %v203
    %v205 = vlaneseq
    %v206 = vshrl.u32 %v205, 7
    %v207 = vsub.s32 1, %v206
    %v208 = vrot.slane %v199, %v207
    %v243 = vunpack.c.l.b16 %v167
    %v244 = vunpack.c.h.b16 %v167
    %v245 = vunpack.c.l.b16 %v168
    %v246 = vunpack.c.h.b16 %v168
    %v247 = vunpack.c.l.b16 %v169
    %v248 = vunpack.c.h.b16 %v169
    %v249 = vunpack.c.l.b16 %v170
    %v250 = vunpack.c.h.b16 %v170
    %v251 = vunpack.c.l.b16 %v171
    %v252 = vunpack.c.h.b16 %v171
    %v253 = vunpack.c.l.b16 %v172
    %v254 = vunpack.c.h.b16 %v172
    %v255 = vunpack.c.l.b16 %v173
    %v256 = vunpack.c.h.b16 %v173
    %v257 = vunpack.c.l.b16 %v174
    %v258 = vunpack.c.h.b16 %v174
    %v259 = vunpack.c.l.b16 %v175
    %v260 = vunpack.c.h.b16 %v175
    %v261 = vunpack.c.l.b16 %v176
    %v262 = vunpack.c.h.b16 %v176
    %v263 = vunpack.c.l.b16 %v177
    %v264 = vunpack.c.h.b16 %v177
    %v265 = vunpack.c.l.b16 %v178
    %v266 = vunpack.c.h.b16 %v178
    %v267 = vunpack.c.l.b16 %v179
    %v268 = vunpack.c.h.b16 %v179
    %v269 = vunpack.c.l.b16 %v180
    %v270 = vunpack.c.h.b16 %v180
    %v271 = vunpack.c.l.b16 %v181
    %v272 = vunpack.c.h.b16 %v181
    %v273 = vunpack.c.l.b16 %v182
    %v274 = vunpack.c.h.b16 %v182
    %v275 = vunpack.c.l.b16 %v183
    %v276 = vunpack.c.h.b16 %v183
    %v277 = vunpack.c.l.b16 %v184
    %v278 = vunpack.c.h.b16 %v184
    %v279 = vunpack.c.l.b16 %v185
    %v280 = vunpack.c.h.b16 %v185
    %v281 = vunpack.c.l.b16 %v186
    %v282 = vunpack.c.h.b16 %v186
    %v283 = vunpack.c.l.b16 %v187
    %v284 = vunpack.c.h.b16 %v187
    %v285 = vunpack.c.l.b16 %v188
    %v286 = vunpack.c.h.b16 %v188
    %v287 = vunpack.c.l.b16 %v189
    %v288 = vunpack.c.h.b16 %v189
    %v289 = vunpack.c.l.b16 %v190
    %v290 = vunpack.c.h.b16 %v190
    %v291 = vunpack.c.l.b16 %v191
    %v292 = vunpack.c.h.b16 %v191
    %v293 = vunpack.c.l.b16 %v192
    %v294 = vunpack.c.h.b16 %v192
    %v295 = vunpack.c.l.b16 %v193
    %v296 = vunpack.c.h.b16 %v193
    %v297 = vunpack.c.l.b16 %v194
    %v298 = vunpack.c.h.b16 %v194
    %v299 = vunpack.c.l.b16 %v195
    %v300 = vunpack.c.h.b16 %v195
    %v301 = vunpack.c.l.b16 %v196
    %v302 = vunpack.c.h.b16 %v196
    %v303 = vunpack.c.l.b16 %v197
    %v304 = vunpack.c.h.b16 %v197
    %v305 = vunpack.c.l.b16 %v198
    %v306 = vunpack.c.h.b16 %v198
    %v307 = vpack.c.b16 %v245, %v243
    %v308 = vpack.c.b16 %v246, %v244
    %v309 = vpack.c.b16 %v249, %v247
    %v310 = vpack.c.b16 %v250, %v248
    %v311 = vpack.c.b16 %v253, %v251
    %v312 = vpack.c.b16 %v254, %v252
    %v313 = vpack.c.b16 %v257, %v255
    %v314 = vpack.c.b16 %v258, %v256
    %v315 = vpack.c.b16 %v261, %v259
    %v316 = vpack.c.b16 %v262, %v260
    %v317 = vpack.c.b16 %v265, %v263
    %v318 = vpack.c.b16 %v266, %v264
    %v319 = vpack.c.b16 %v269, %v267
    %v320 = vpack.c.b16 %v270, %v268
    %v321 = vpack.c.b16 %v273, %v271
    %v322 = vpack.c.b16 %v274, %v272
    %v323 = vpack.c.b16 %v277, %v275
    %v324 = vpack.c.b16 %v278, %v276
    %v325 = vpack.c.b16 %v281, %v279
    %v326 = vpack.c.b16 %v282, %v280
    %v327 = vpack.c.b16 %v285, %v283
    %v328 = vpack.c.b16 %v286, %v284
    %v329 = vpack.c.b16 %v289, %v287
    %v330 = vpack.c.b16 %v290, %v288
    %v331 = vpack.c.b16 %v293, %v291
    %v332 = vpack.c.b16 %v294, %v292
    %v333 = vpack.c.b16 %v297, %v295
    %v334 = vpack.c.b16 %v298, %v296
    %v335 = vpack.c.b16 %v301, %v299
    %v336 = vpack.c.b16 %v302, %v300
    %v337 = vpack.c.b16 %v305, %v303
    %v338 = vpack.c.b16 %v306, %v304
    %371 = vmatprep.subr.bf16.mxu0 %v308
    %372 = vmatpush1.bf16.msra.mxu0 %v307
    %373 = vmatprep.subr.bf16.mxu0 %v310
    %374 = vmatpush1.bf16.msra.mxu0 %v309
    %375 = vmatprep.subr.bf16.mxu0 %v312
    %376 = vmatpush1.bf16.msra.mxu0 %v311
    %377 = vmatprep.subr.bf16.mxu0 %v314
    %378 = vmatpush1.bf16.msra.mxu0 %v313
    %379 = vmatprep.subr.bf16.mxu0 %v316
    %380 = vmatpush1.bf16.msra.mxu0 %v315
    %381 = vmatprep.subr.bf16.mxu0 %v318
    %382 = vmatpush1.bf16.msra.mxu0 %v317
    %383 = vmatprep.subr.bf16.mxu0 %v320
    %384 = vmatpush1.bf16.msra.mxu0 %v319
    %385 = vmatprep.subr.bf16.mxu0 %v322
    %386 = vmatpush1.bf16.msra.mxu0 %v321
    %387 = vmatprep.subr.bf16.mxu0 %v324
    %388 = vmatpush1.bf16.msra.mxu0 %v323
    %389 = vmatprep.subr.bf16.mxu0 %v326
    %390 = vmatpush1.bf16.msra.mxu0 %v325
    %391 = vmatprep.subr.bf16.mxu0 %v328
    %392 = vmatpush1.bf16.msra.mxu0 %v327
    %393 = vmatprep.subr.bf16.mxu0 %v330
    %394 = vmatpush1.bf16.msra.mxu0 %v329
    %395 = vmatprep.subr.bf16.mxu0 %v332
    %396 = vmatpush1.bf16.msra.mxu0 %v331
    %397 = vmatprep.subr.bf16.mxu0 %v334
    %398 = vmatpush1.bf16.msra.mxu0 %v333
    %399 = vmatprep.subr.bf16.mxu0 %v336
    %400 = vmatpush1.bf16.msra.mxu0 %v335
    %401 = vmatprep.subr.bf16.mxu0 %v338
    %402 = vmatpush1.bf16.msra.mxu0 %v337
    %403 = vmatprep.mubr.bf16.mxu0 %v166
    %404 = vmatmul.mubr.bf16.gmra.mrb[0].mxu0 %v165
    %v405 = vpop.f32.mrb[0].mxu0
    %v406 = vadd.f32 %v204, %v405
    %v407 = vpop.f32.mrb[0].mxu0
    %v408 = vadd.f32 %v208, %v407
    %v409 = vpop.f32.mrb[0].mxu0
    %v410 = vadd.f32 %v204, %v409
    %v411 = vpop.f32.mrb[0].mxu0
    %v412 = vadd.f32 %v208, %v411
    %413 = vdwg.mxu0
    %v414 = vmax.f32 %v406, 0.0
    %v415 = vmax.f32 %v408, 0.0
    %v416 = vmax.f32 %v410, 0.0
    %v417 = vmax.f32 %v412, 0.0
    %v418 = vpack.c.bf16 %v416, %v414
    %v419 = vpack.c.bf16 %v417, %v415
    %v420 = vld [vmem:[%s5] sm:$0xf]
    %v421 = vld [vmem:[%s5 + $0x4] sm:$0xf]
    %v422 = vld [vmem:[%s5 + $0x8] sm:$0xf]
    %v423 = vld [vmem:[%s5 + $0xc] sm:$0xf]
    %v424 = vld [vmem:[%s5 + $0x10] sm:$0xf]
    %v425 = vld [vmem:[%s5 + $0x14] sm:$0xf]
    %v426 = vld [vmem:[%s5 + $0x18] sm:$0xf]
    %v427 = vld [vmem:[%s5 + $0x1c] sm:$0xf]
    %v428 = vld [vmem:[%s5 + $0x20] sm:$0xf]
    %v429 = vld [vmem:[%s5 + $0x24] sm:$0xf]
    %v430 = vld [vmem:[%s5 + $0x28] sm:$0xf]
    %v431 = vld [vmem:[%s5 + $0x2c] sm:$0xf]
    %v432 = vld [vmem:[%s5 + $0x30] sm:$0xf]
    %v433 = vld [vmem:[%s5 + $0x34] sm:$0xf]
    %v434 = vld [vmem:[%s5 + $0x38] sm:$0xf]
    %v435 = vld [vmem:[%s5 + $0x3c] sm:$0xf]
    %v436 = vld [vmem:[%s5 + $0x40] sm:$0xf]
    %v437 = vld [vmem:[%s5 + $0x44] sm:$0xf]
    %v438 = vld [vmem:[%s5 + $0x48] sm:$0xf]
    %v439 = vld [vmem:[%s5 + $0x4c] sm:$0xf]
    %v440 = vld [vmem:[%s5 + $0x50] sm:$0xf]
    %v441 = vld [vmem:[%s5 + $0x54] sm:$0xf]
    %v442 = vld [vmem:[%s5 + $0x58] sm:$0xf]
    %v443 = vld [vmem:[%s5 + $0x5c] sm:$0xf]
    %v444 = vld [vmem:[%s5 + $0x60] sm:$0xf]
    %v445 = vld [vmem:[%s5 + $0x64] sm:$0xf]
    %v446 = vld [vmem:[%s5 + $0x68] sm:$0xf]
    %v447 = vld [vmem:[%s5 + $0x6c] sm:$0xf]
    %v448 = vld [vmem:[%s5 + $0x70] sm:$0xf]
    %v449 = vld [vmem:[%s5 + $0x74] sm:$0xf]
    %v450 = vld [vmem:[%s5 + $0x78] sm:$0xf]
    %v451 = vld [vmem:[%s5 + $0x7c] sm:$0xf]
    %v452 = vld [vmem:[%s6] sm:$0x1]
    %v454 = vlaneseq
    %v455 = vshrl.u32 %v454, 7
    %v456 = vsub.s32 0, %v455
    %v457 = vrot.slane %v452, %v456
    %v491 = vunpack.c.l.b16 %v420
    %v492 = vunpack.c.l.b16 %v421
    %v493 = vunpack.c.l.b16 %v422
    %v494 = vunpack.c.l.b16 %v423
    %v495 = vunpack.c.l.b16 %v424
    %v496 = vunpack.c.l.b16 %v425
    %v497 = vunpack.c.l.b16 %v426
    %v498 = vunpack.c.l.b16 %v427
    %v499 = vunpack.c.l.b16 %v428
    %v500 = vunpack.c.l.b16 %v429
    %v501 = vunpack.c.l.b16 %v430
    %v502 = vunpack.c.l.b16 %v431
    %v503 = vunpack.c.l.b16 %v432
    %v504 = vunpack.c.l.b16 %v433
    %v505 = vunpack.c.l.b16 %v434
    %v506 = vunpack.c.l.b16 %v435
    %v507 = vunpack.c.l.b16 %v436
    %v508 = vunpack.c.l.b16 %v437
    %v509 = vunpack.c.l.b16 %v438
    %v510 = vunpack.c.l.b16 %v439
    %v511 = vunpack.c.l.b16 %v440
    %v512 = vunpack.c.l.b16 %v441
    %v513 = vunpack.c.l.b16 %v442
    %v514 = vunpack.c.l.b16 %v443
    %v515 = vunpack.c.l.b16 %v444
    %v516 = vunpack.c.l.b16 %v445
    %v517 = vunpack.c.l.b16 %v446
    %v518 = vunpack.c.l.b16 %v447
    %v519 = vunpack.c.l.b16 %v448
    %v520 = vunpack.c.l.b16 %v449
    %v521 = vunpack.c.l.b16 %v450
    %v522 = vunpack.c.l.b16 %v451
    %v523 = vpack.c.b16 %v492, %v491
    %v524 = vpack.c.b16 %v494, %v493
    %v525 = vpack.c.b16 %v496, %v495
    %v526 = vpack.c.b16 %v498, %v497
    %v527 = vpack.c.b16 %v500, %v499
    %v528 = vpack.c.b16 %v502, %v501
    %v529 = vpack.c.b16 %v504, %v503
    %v530 = vpack.c.b16 %v506, %v505
    %v531 = vpack.c.b16 %v508, %v507
    %v532 = vpack.c.b16 %v510, %v509
    %v533 = vpack.c.b16 %v512, %v511
    %v534 = vpack.c.b16 %v514, %v513
    %v535 = vpack.c.b16 %v516, %v515
    %v536 = vpack.c.b16 %v518, %v517
    %v537 = vpack.c.b16 %v520, %v519
    %v538 = vpack.c.b16 %v522, %v521
    %555 = vmatprep.subr.bf16.mxu0 0
    %556 = vmatpush1.bf16.msra.mxu0 %v523
    %557 = vmatprep.subr.bf16.mxu0 0
    %558 = vmatpush1.bf16.msra.mxu0 %v524
    %559 = vmatprep.subr.bf16.mxu0 0
    %560 = vmatpush1.bf16.msra.mxu0 %v525
    %561 = vmatprep.subr.bf16.mxu0 0
    %562 = vmatpush1.bf16.msra.mxu0 %v526
    %563 = vmatprep.subr.bf16.mxu0 0
    %564 = vmatpush1.bf16.msra.mxu0 %v527
    %565 = vmatprep.subr.bf16.mxu0 0
    %566 = vmatpush1.bf16.msra.mxu0 %v528
    %567 = vmatprep.subr.bf16.mxu0 0
    %568 = vmatpush1.bf16.msra.mxu0 %v529
    %569 = vmatprep.subr.bf16.mxu0 0
    %570 = vmatpush1.bf16.msra.mxu0 %v530
    %571 = vmatprep.subr.bf16.mxu0 0
    %572 = vmatpush1.bf16.msra.mxu0 %v531
    %573 = vmatprep.subr.bf16.mxu0 0
    %574 = vmatpush1.bf16.msra.mxu0 %v532
    %575 = vmatprep.subr.bf16.mxu0 0
    %576 = vmatpush1.bf16.msra.mxu0 %v533
    %577 = vmatprep.subr.bf16.mxu0 0
    %578 = vmatpush1.bf16.msra.mxu0 %v534
    %579 = vmatprep.subr.bf16.mxu0 0
    %580 = vmatpush1.bf16.msra.mxu0 %v535
    %581 = vmatprep.subr.bf16.mxu0 0
    %582 = vmatpush1.bf16.msra.mxu0 %v536
    %583 = vmatprep.subr.bf16.mxu0 0
    %584 = vmatpush1.bf16.msra.mxu0 %v537
    %585 = vmatprep.subr.bf16.mxu0 0
    %586 = vmatpush1.bf16.msra.mxu0 %v538
    %587 = vmatprep.mubr.bf16.mxu0 %v419
    %588 = vmatmul.mubr.bf16.gmra.mrb[0].mxu0 %v418
    %v589 = vpop.f32.mrb[0].mxu0
    %v590 = vadd.f32 %v457, %v589
    %v591 = vpop.f32.mrb[0].mxu0
    %v592 = vpop.f32.mrb[0].mxu0
    %v593 = vadd.f32 %v457, %v592
    %v594 = vpop.f32.mrb[0].mxu0
    %595 = vdwg.mxu0
    %vm596 = vcmask 64512
    %597 = vst.msk [vmem:[%s7] sm:$0xff] %vm596, %v590
    %598 = vst.msk [vmem:[%s7 + $0x8] sm:$0xff] %vm596, %v593
    // Predicated region
    $region34: #{tpu_custom_call.1} parent=1 // pred_check
      _
    $region35: #{tpu_custom_call.1} parent=1 // pred_check_branch
      %600 = sbr.rel (0) target = $region37
    $region36: #{tpu_custom_call.1} parent=1 // pred_region
      _
    $region37: #{tpu_custom_call.1} parent=1 // pred_fallthru
      _
    // Predicated region
    $region38: #{tpu_custom_call.1} parent=1 // pred_check
      _
    $region39: #{tpu_custom_call.1} parent=1 // pred_check_branch
      %602 = sbr.rel (0) target = $region41
    $region40: #{tpu_custom_call.1} parent=1 // pred_region
      _
    $region41: #{tpu_custom_call.1} parent=1 // pred_fallthru
      _
    %603 = vsyncpa [#allocation3], 1

// kernel: tpu_custom_call.1
$region0: #{tpu_custom_call.1}
  #allocation0 [shape = 'u32[]', space=smem, size = 0x4, offset = 0x4, fixed_abs, tag = 'smem constant byte address 0x4 - core index']
  #allocation1 [shape = 'u32[144,128]{1,0:T(1,128)}', space=vmem, size = 0x12000, scoped, tag = 'internal scratch']
  %s0 = inlined_call_operand.vmem [shape: f32[16,3], index: 0, kind: input, shape index: {}]
  %s1 = inlined_call_operand.vmem [shape: f32[3,256], index: 1, kind: input, shape index: {}]
  %s2 = inlined_call_operand.vmem [shape: f32[1,256], index: 2, kind: input, shape index: {}]
  %s3 = inlined_call_operand.hbm [shape: bf16[256,256], index: 3, kind: input, shape index: {}]
  %s4 = inlined_call_operand.vmem [shape: f32[1,256], index: 4, kind: input, shape index: {}]
  %s5 = inlined_call_operand.vmem [shape: bf16[256,8], index: 5, kind: input, shape index: {}]
  %s6 = inlined_call_operand.vmem [shape: f32[1,8], index: 6, kind: input, shape index: {}]
  %s7 = inlined_call_operand.vmem [shape: f32[16,8], index: 7, kind: output, shape index: {}]
  %s8 = sld [smem:[#allocation0]]
  $region42: #{tpu_custom_call.1} parent=0
    _
  %s10 = ssub.s32 1, %s8
  %s11 = scalar_select 0, %s10, %s8
  $region1: #{tpu_custom_call.1} parent=0
    #allocation2 [shape = 'u8[131072]{0}', space=vmem, size = 0x20000, scoped, tag = 'input window, operand 3, single buffered']
    #allocation3 [shape = 's32[1]{0}', space=sflag, size = 0x4, scoped, tag = 'scoped memory for tpu_custom_call.1']
    %12 = vsyncpa [#allocation3], 0
    // Predicated region
    $region2: #{tpu_custom_call.1} parent=1 // pred_check
      _
    $region3: #{tpu_custom_call.1} parent=1 // pred_check_branch
      %14 = sbr.rel (0) target = $region5
    $region4: #{tpu_custom_call.1} parent=1 // pred_region
      _
    $region5: #{tpu_custom_call.1} parent=1 // pred_fallthru
      _
    // Predicated region
    $region6: #{tpu_custom_call.1} parent=1 // pred_check
      _
    $region7: #{tpu_custom_call.1} parent=1 // pred_check_branch
      %16 = sbr.rel (0) target = $region9
    $region8: #{tpu_custom_call.1} parent=1 // pred_region
      _
    $region9: #{tpu_custom_call.1} parent=1 // pred_fallthru
      _
    // Predicated region
    $region10: #{tpu_custom_call.1} parent=1 // pred_check
      _
    $region11: #{tpu_custom_call.1} parent=1 // pred_check_branch
      %18 = sbr.rel (0) target = $region13
    $region12: #{tpu_custom_call.1} parent=1 // pred_region
      _
    $region13: #{tpu_custom_call.1} parent=1 // pred_fallthru
      _
    // Predicated region
    $region14: #{tpu_custom_call.1} parent=1 // pred_check
      _
    $region15: #{tpu_custom_call.1} parent=1 // pred_check_branch
      %20 = sbr.rel (0) target = $region17
    $region16: #{tpu_custom_call.1} parent=1 // pred_region
      %s22 = ssub.s32 4096, 4096
      %23 = vsyncadd [#allocation3], %s22
      %s24 = sshll.u32 [#allocation2], 4
      %s25 = int_to_ptr.vmem [resolvable:$true] %s24
      %30 = dma.hbm_to_vmem [thread:$0]  %s3, 4096, %s25, [#allocation3], 128, 128, 8
    $region17: #{tpu_custom_call.1} parent=1 // pred_fallthru
      _
    // Predicated region
    $region18: #{tpu_custom_call.1} parent=1 // pred_check
      _
    $region19: #{tpu_custom_call.1} parent=1 // pred_check_branch
      %32 = sbr.rel (0) target = $region21
    $region20: #{tpu_custom_call.1} parent=1 // pred_region
      _
    $region21: #{tpu_custom_call.1} parent=1 // pred_fallthru
      _
    // Predicated region
    $region22: #{tpu_custom_call.1} parent=1 // pred_check
      _
    $region23: #{tpu_custom_call.1} parent=1 // pred_check_branch
      %34 = sbr.rel (0) target = $region25
    $region24: #{tpu_custom_call.1} parent=1 // pred_region
      _
    $region25: #{tpu_custom_call.1} parent=1 // pred_fallthru
      _
    // Predicated region
    $region26: #{tpu_custom_call.1} parent=1 // pred_check
      _
    $region27: #{tpu_custom_call.1} parent=1 // pred_check_branch
      %36 = sbr.rel (0) target = $region29
    $region28: #{tpu_custom_call.1} parent=1 // pred_region
      _
    $region29: #{tpu_custom_call.1} parent=1 // pred_fallthru
      _
    // Predicated region
    $region30: #{tpu_custom_call.1} parent=1 // pred_check
      _
    $region31: #{tpu_custom_call.1} parent=1 // pred_check_branch
      %38 = sbr.rel (0) target = $region33
    $region32: #{tpu_custom_call.1} parent=1 // pred_region
      %39 = dma.done [#allocation3], 4096
    $region33: #{tpu_custom_call.1} parent=1 // pred_fallthru
      _
    %v41 = vld [vmem:[%s0] sm:$0xff]
    %v42 = vld [vmem:[%s0 + $0x8] sm:$0xff]
    %v43 = vld [vmem:[%s1] sm:$0x77]
    %v44 = vld [vmem:[%s2] sm:$0x3]
    %46 = vset.pattern.permute.xlu0 0
    %47 = vperm.xlu0 %46, %v41
    %v48 = vpop.permute.xlu0 %47
    %51 = vset.pattern.permute.xlu0 0
    %52 = vperm.xlu0 %51, %v42
    %v53 = vpop.permute.xlu0 %52
    %v56 = vlaneseq
    %v57 = vshrl.u32 %v56, 7
    %v58 = vsub.s32 0, %v57
    %v59 = vrot.slane %v43, %v58
    %v60 = vlaneseq
    %v61 = vshrl.u32 %v60, 7
    %v62 = vsub.s32 4, %v61
    %v63 = vrot.slane %v43, %v62
    %v66 = vlaneseq
    %v67 = vshrl.u32 %v66, 7
    %v68 = vsub.s32 0, %v67
    %v69 = vrot.slane %v59, %v68
    %v70 = vlaneseq
    %v71 = vshrl.u32 %v70, 7
    %v72 = vsub.s32 0, %v71
    %v73 = vrot.slane %v63, %v72
    %v74 = vmul.f32 %v48, %v69
    %v75 = vmul.f32 %v48, %v73
    %v76 = vmul.f32 %v53, %v69
    %v77 = vmul.f32 %v53, %v73
    %v79 = vlaneseq
    %v80 = vshrl.u32 %v79, 7
    %v81 = vsub.s32 0, %v80
    %v82 = vrot.slane %v44, %v81
    %v83 = vlaneseq
    %v84 = vshrl.u32 %v83, 7
    %v85 = vsub.s32 1, %v84
    %v86 = vrot.slane %v44, %v85
    %v89 = vadd.f32 %v82, %v74
    %v90 = vadd.f32 %v86, %v75
    %v91 = vadd.f32 %v82, %v76
    %v92 = vadd.f32 %v86, %v77
    %93 = vset.pattern.permute.xlu0 1
    %94 = vperm.xlu0 %93, %v41
    %v95 = vpop.permute.xlu0 %94
    %97 = vset.pattern.permute.xlu0 1
    %98 = vperm.xlu0 %97, %v42
    %v99 = vpop.permute.xlu0 %98
    %v101 = vlaneseq
    %v102 = vshrl.u32 %v101, 7
    %v103 = vsub.s32 1, %v102
    %v104 = vrot.slane %v43, %v103
    %v105 = vlaneseq
    %v106 = vshrl.u32 %v105, 7
    %v107 = vsub.s32 5, %v106
    %v108 = vrot.slane %v43, %v107
    %v111 = vlaneseq
    %v112 = vshrl.u32 %v111, 7
    %v113 = vsub.s32 1, %v112
    %v114 = vrot.slane %v104, %v113
    %v115 = vlaneseq
    %v116 = vshrl.u32 %v115, 7
    %v117 = vsub.s32 1, %v116
    %v118 = vrot.slane %v108, %v117
    %v119 = vmul.f32 %v95, %v114
    %v120 = vmul.f32 %v95, %v118
    %v121 = vmul.f32 %v99, %v114
    %v122 = vmul.f32 %v99, %v118
    %v123 = vadd.f32 %v89, %v119
    %v124 = vadd.f32 %v90, %v120
    %v125 = vadd.f32 %v91, %v121
    %v126 = vadd.f32 %v92, %v122
    %127 = vset.pattern.permute.xlu0 2
    %128 = vperm.xlu0 %127, %v41
    %v129 = vpop.permute.xlu0 %128
    %131 = vset.pattern.permute.xlu0 2
    %132 = vperm.xlu0 %131, %v42
    %v133 = vpop.permute.xlu0 %132
    %v135 = vlaneseq
    %v136 = vshrl.u32 %v135, 7
    %v137 = vsub.s32 2, %v136
    %v138 = vrot.slane %v43, %v137
    %v139 = vlaneseq
    %v140 = vshrl.u32 %v139, 7
    %v141 = vsub.s32 6, %v140
    %v142 = vrot.slane %v43, %v141
    %v145 = vlaneseq
    %v146 = vshrl.u32 %v145, 7
    %v147 = vsub.s32 2, %v146
    %v148 = vrot.slane %v138, %v147
    %v149 = vlaneseq
    %v150 = vshrl.u32 %v149, 7
    %v151 = vsub.s32 2, %v150
    %v152 = vrot.slane %v142, %v151
    %v153 = vmul.f32 %v129, %v148
    %v154 = vmul.f32 %v129, %v152
    %v155 = vmul.f32 %v133, %v148
    %v156 = vmul.f32 %v133, %v152
    %v157 = vadd.f32 %v123, %v153
    %v158 = vadd.f32 %v124, %v154
    %v159 = vadd.f32 %v125, %v155
    %v160 = vadd.f32 %v126, %v156
    %v161 = vmax.f32 %v157, 0.0
    %v162 = vmax.f32 %v158, 0.0
    %v163 = vmax.f32 %v159, 0.0
    %v164 = vmax.f32 %v160, 0.0
    %v165 = vpack.c.bf16 %v163, %v161
    %v166 = vpack.c.bf16 %v164, %v162
    %v167 = vld [vmem:[#allocation2] sm:$0xff]
    %v168 = vld [vmem:[#allocation2 + $0x8] sm:$0xff]
    %v169 = vld [vmem:[#allocation2 + $0x10] sm:$0xff]
    %v170 = vld [vmem:[#allocation2 + $0x18] sm:$0xff]
    %v171 = vld [vmem:[#allocation2 + $0x20] sm:$0xff]
    %v172 = vld [vmem:[#allocation2 + $0x28] sm:$0xff]
    %v173 = vld [vmem:[#allocation2 + $0x30] sm:$0xff]
    %v174 = vld [vmem:[#allocation2 + $0x38] sm:$0xff]
    %v175 = vld [vmem:[#allocation2 + $0x40] sm:$0xff]
    %v176 = vld [vmem:[#allocation2 + $0x48] sm:$0xff]
    %v177 = vld [vmem:[#allocation2 + $0x50] sm:$0xff]
    %v178 = vld [vmem:[#allocation2 + $0x58] sm:$0xff]
    %v179 = vld [vmem:[#allocation2 + $0x60] sm:$0xff]
    %v180 = vld [vmem:[#allocation2 + $0x68] sm:$0xff]
    %v181 = vld [vmem:[#allocation2 + $0x70] sm:$0xff]
    %v182 = vld [vmem:[#allocation2 + $0x78] sm:$0xff]
    %v183 = vld [vmem:[#allocation2 + $0x80] sm:$0xff]
    %v184 = vld [vmem:[#allocation2 + $0x88] sm:$0xff]
    %v185 = vld [vmem:[#allocation2 + $0x90] sm:$0xff]
    %v186 = vld [vmem:[#allocation2 + $0x98] sm:$0xff]
    %v187 = vld [vmem:[#allocation2 + $0xa0] sm:$0xff]
    %v188 = vld [vmem:[#allocation2 + $0xa8] sm:$0xff]
    %v189 = vld [vmem:[#allocation2 + $0xb0] sm:$0xff]
    %v190 = vld [vmem:[#allocation2 + $0xb8] sm:$0xff]
    %v191 = vld [vmem:[#allocation2 + $0xc0] sm:$0xff]
    %v192 = vld [vmem:[#allocation2 + $0xc8] sm:$0xff]
    %v193 = vld [vmem:[#allocation2 + $0xd0] sm:$0xff]
    %v194 = vld [vmem:[#allocation2 + $0xd8] sm:$0xff]
    %v195 = vld [vmem:[#allocation2 + $0xe0] sm:$0xff]
    %v196 = vld [vmem:[#allocation2 + $0xe8] sm:$0xff]
    %v197 = vld [vmem:[#allocation2 + $0xf0] sm:$0xff]
    %v198 = vld [vmem:[#allocation2 + $0xf8] sm:$0xff]
    %v199 = vld [vmem:[%s4] sm:$0x3]
    %v201 = vlaneseq
    %v202 = vshrl.u32 %v201, 7
    %v203 = vsub.s32 0, %v202
    %v204 = vrot.slane %v199, %v203
    %v205 = vlaneseq
    %v206 = vshrl.u32 %v205, 7
    %v207 = vsub.s32 1, %v206
    %v208 = vrot.slane %v199, %v207
    %v243 = vunpack.c.l.b16 %v167
    %v244 = vunpack.c.h.b16 %v167
    %v245 = vunpack.c.l.b16 %v168
    %v246 = vunpack.c.h.b16 %v168
    %v247 = vunpack.c.l.b16 %v169
    %v248 = vunpack.c.h.b16 %v169
    %v249 = vunpack.c.l.b16 %v170
    %v250 = vunpack.c.h.b16 %v170
    %v251 = vunpack.c.l.b16 %v171
    %v252 = vunpack.c.h.b16 %v171
    %v253 = vunpack.c.l.b16 %v172
    %v254 = vunpack.c.h.b16 %v172
    %v255 = vunpack.c.l.b16 %v173
    %v256 = vunpack.c.h.b16 %v173
    %v257 = vunpack.c.l.b16 %v174
    %v258 = vunpack.c.h.b16 %v174
    %v259 = vunpack.c.l.b16 %v175
    %v260 = vunpack.c.h.b16 %v175
    %v261 = vunpack.c.l.b16 %v176
    %v262 = vunpack.c.h.b16 %v176
    %v263 = vunpack.c.l.b16 %v177
    %v264 = vunpack.c.h.b16 %v177
    %v265 = vunpack.c.l.b16 %v178
    %v266 = vunpack.c.h.b16 %v178
    %v267 = vunpack.c.l.b16 %v179
    %v268 = vunpack.c.h.b16 %v179
    %v269 = vunpack.c.l.b16 %v180
    %v270 = vunpack.c.h.b16 %v180
    %v271 = vunpack.c.l.b16 %v181
    %v272 = vunpack.c.h.b16 %v181
    %v273 = vunpack.c.l.b16 %v182
    %v274 = vunpack.c.h.b16 %v182
    %v275 = vunpack.c.l.b16 %v183
    %v276 = vunpack.c.h.b16 %v183
    %v277 = vunpack.c.l.b16 %v184
    %v278 = vunpack.c.h.b16 %v184
    %v279 = vunpack.c.l.b16 %v185
    %v280 = vunpack.c.h.b16 %v185
    %v281 = vunpack.c.l.b16 %v186
    %v282 = vunpack.c.h.b16 %v186
    %v283 = vunpack.c.l.b16 %v187
    %v284 = vunpack.c.h.b16 %v187
    %v285 = vunpack.c.l.b16 %v188
    %v286 = vunpack.c.h.b16 %v188
    %v287 = vunpack.c.l.b16 %v189
    %v288 = vunpack.c.h.b16 %v189
    %v289 = vunpack.c.l.b16 %v190
    %v290 = vunpack.c.h.b16 %v190
    %v291 = vunpack.c.l.b16 %v191
    %v292 = vunpack.c.h.b16 %v191
    %v293 = vunpack.c.l.b16 %v192
    %v294 = vunpack.c.h.b16 %v192
    %v295 = vunpack.c.l.b16 %v193
    %v296 = vunpack.c.h.b16 %v193
    %v297 = vunpack.c.l.b16 %v194
    %v298 = vunpack.c.h.b16 %v194
    %v299 = vunpack.c.l.b16 %v195
    %v300 = vunpack.c.h.b16 %v195
    %v301 = vunpack.c.l.b16 %v196
    %v302 = vunpack.c.h.b16 %v196
    %v303 = vunpack.c.l.b16 %v197
    %v304 = vunpack.c.h.b16 %v197
    %v305 = vunpack.c.l.b16 %v198
    %v306 = vunpack.c.h.b16 %v198
    %v307 = vpack.c.b16 %v245, %v243
    %v308 = vpack.c.b16 %v246, %v244
    %v309 = vpack.c.b16 %v249, %v247
    %v310 = vpack.c.b16 %v250, %v248
    %v311 = vpack.c.b16 %v253, %v251
    %v312 = vpack.c.b16 %v254, %v252
    %v313 = vpack.c.b16 %v257, %v255
    %v314 = vpack.c.b16 %v258, %v256
    %v315 = vpack.c.b16 %v261, %v259
    %v316 = vpack.c.b16 %v262, %v260
    %v317 = vpack.c.b16 %v265, %v263
    %v318 = vpack.c.b16 %v266, %v264
    %v319 = vpack.c.b16 %v269, %v267
    %v320 = vpack.c.b16 %v270, %v268
    %v321 = vpack.c.b16 %v273, %v271
    %v322 = vpack.c.b16 %v274, %v272
    %v323 = vpack.c.b16 %v277, %v275
    %v324 = vpack.c.b16 %v278, %v276
    %v325 = vpack.c.b16 %v281, %v279
    %v326 = vpack.c.b16 %v282, %v280
    %v327 = vpack.c.b16 %v285, %v283
    %v328 = vpack.c.b16 %v286, %v284
    %v329 = vpack.c.b16 %v289, %v287
    %v330 = vpack.c.b16 %v290, %v288
    %v331 = vpack.c.b16 %v293, %v291
    %v332 = vpack.c.b16 %v294, %v292
    %v333 = vpack.c.b16 %v297, %v295
    %v334 = vpack.c.b16 %v298, %v296
    %v335 = vpack.c.b16 %v301, %v299
    %v336 = vpack.c.b16 %v302, %v300
    %v337 = vpack.c.b16 %v305, %v303
    %v338 = vpack.c.b16 %v306, %v304
    %371 = vmatprep.subr.bf16.mxu0 %v308
    %372 = vmatpush1.bf16.msra.mxu0 %v307
    %373 = vmatprep.subr.bf16.mxu0 %v310
    %374 = vmatpush1.bf16.msra.mxu0 %v309
    %375 = vmatprep.subr.bf16.mxu0 %v312
    %376 = vmatpush1.bf16.msra.mxu0 %v311
    %377 = vmatprep.subr.bf16.mxu0 %v314
    %378 = vmatpush1.bf16.msra.mxu0 %v313
    %379 = vmatprep.subr.bf16.mxu0 %v316
    %380 = vmatpush1.bf16.msra.mxu0 %v315
    %381 = vmatprep.subr.bf16.mxu0 %v318
    %382 = vmatpush1.bf16.msra.mxu0 %v317
    %383 = vmatprep.subr.bf16.mxu0 %v320
    %384 = vmatpush1.bf16.msra.mxu0 %v319
    %385 = vmatprep.subr.bf16.mxu0 %v322
    %386 = vmatpush1.bf16.msra.mxu0 %v321
    %387 = vmatprep.subr.bf16.mxu0 %v324
    %388 = vmatpush1.bf16.msra.mxu0 %v323
    %389 = vmatprep.subr.bf16.mxu0 %v326
    %390 = vmatpush1.bf16.msra.mxu0 %v325
    %391 = vmatprep.subr.bf16.mxu0 %v328
    %392 = vmatpush1.bf16.msra.mxu0 %v327
    %393 = vmatprep.subr.bf16.mxu0 %v330
    %394 = vmatpush1.bf16.msra.mxu0 %v329
    %395 = vmatprep.subr.bf16.mxu0 %v332
    %396 = vmatpush1.bf16.msra.mxu0 %v331
    %397 = vmatprep.subr.bf16.mxu0 %v334
    %398 = vmatpush1.bf16.msra.mxu0 %v333
    %399 = vmatprep.subr.bf16.mxu0 %v336
    %400 = vmatpush1.bf16.msra.mxu0 %v335
    %401 = vmatprep.subr.bf16.mxu0 %v338
    %402 = vmatpush1.bf16.msra.mxu0 %v337
    %403 = vmatprep.mubr.bf16.mxu0 %v166
    %404 = vmatmul.mubr.bf16.gmra.mrb[0].mxu0 %v165
    %v405 = vpop.f32.mrb[0].mxu0
    %v406 = vadd.f32 %v204, %v405
    %v407 = vpop.f32.mrb[0].mxu0
    %v408 = vadd.f32 %v208, %v407
    %v409 = vpop.f32.mrb[0].mxu0
    %v410 = vadd.f32 %v204, %v409
    %v411 = vpop.f32.mrb[0].mxu0
    %v412 = vadd.f32 %v208, %v411
    %413 = vdwg.mxu0
    %v414 = vmax.f32 %v406, 0.0
    %v415 = vmax.f32 %v408, 0.0
    %v416 = vmax.f32 %v410, 0.0
    %v417 = vmax.f32 %v412, 0.0
    %v418 = vpack.c.bf16 %v416, %v414
    %v419 = vpack.c.bf16 %v417, %v415
    %v420 = vld [vmem:[%s5] sm:$0xf]
    %v421 = vld [vmem:[%s5 + $0x4] sm:$0xf]
    %v422 = vld [vmem:[%s5 + $0x8] sm:$0xf]
    %v423 = vld [vmem:[%s5 + $0xc] sm:$0xf]
    %v424 = vld [vmem:[%s5 + $0x10] sm:$0xf]
    %v425 = vld [vmem:[%s5 + $0x14] sm:$0xf]
    %v426 = vld [vmem:[%s5 + $0x18] sm:$0xf]
    %v427 = vld [vmem:[%s5 + $0x1c] sm:$0xf]
    %v428 = vld [vmem:[%s5 + $0x20] sm:$0xf]
    %v429 = vld [vmem:[%s5 + $0x24] sm:$0xf]
    %v430 = vld [vmem:[%s5 + $0x28] sm:$0xf]
    %v431 = vld [vmem:[%s5 + $0x2c] sm:$0xf]
    %v432 = vld [vmem:[%s5 + $0x30] sm:$0xf]
    %v433 = vld [vmem:[%s5 + $0x34] sm:$0xf]
    %v434 = vld [vmem:[%s5 + $0x38] sm:$0xf]
    %v435 = vld [vmem:[%s5 + $0x3c] sm:$0xf]
    %v436 = vld [vmem:[%s5 + $0x40] sm:$0xf]
    %v437 = vld [vmem:[%s5 + $0x44] sm:$0xf]
    %v438 = vld [vmem:[%s5 + $0x48] sm:$0xf]
    %v439 = vld [vmem:[%s5 + $0x4c] sm:$0xf]
    %v440 = vld [vmem:[%s5 + $0x50] sm:$0xf]
    %v441 = vld [vmem:[%s5 + $0x54] sm:$0xf]
    %v442 = vld [vmem:[%s5 + $0x58] sm:$0xf]
    %v443 = vld [vmem:[%s5 + $0x5c] sm:$0xf]
    %v444 = vld [vmem:[%s5 + $0x60] sm:$0xf]
    %v445 = vld [vmem:[%s5 + $0x64] sm:$0xf]
    %v446 = vld [vmem:[%s5 + $0x68] sm:$0xf]
    %v447 = vld [vmem:[%s5 + $0x6c] sm:$0xf]
    %v448 = vld [vmem:[%s5 + $0x70] sm:$0xf]
    %v449 = vld [vmem:[%s5 + $0x74] sm:$0xf]
    %v450 = vld [vmem:[%s5 + $0x78] sm:$0xf]
    %v451 = vld [vmem:[%s5 + $0x7c] sm:$0xf]
    %v452 = vld [vmem:[%s6] sm:$0x1]
    %v454 = vlaneseq
    %v455 = vshrl.u32 %v454, 7
    %v456 = vsub.s32 0, %v455
    %v457 = vrot.slane %v452, %v456
    %v491 = vunpack.c.l.b16 %v420
    %v492 = vunpack.c.l.b16 %v421
    %v493 = vunpack.c.l.b16 %v422
    %v494 = vunpack.c.l.b16 %v423
    %v495 = vunpack.c.l.b16 %v424
    %v496 = vunpack.c.l.b16 %v425
    %v497 = vunpack.c.l.b16 %v426
    %v498 = vunpack.c.l.b16 %v427
    %v499 = vunpack.c.l.b16 %v428
    %v500 = vunpack.c.l.b16 %v429
    %v501 = vunpack.c.l.b16 %v430
    %v502 = vunpack.c.l.b16 %v431
    %v503 = vunpack.c.l.b16 %v432
    %v504 = vunpack.c.l.b16 %v433
    %v505 = vunpack.c.l.b16 %v434
    %v506 = vunpack.c.l.b16 %v435
    %v507 = vunpack.c.l.b16 %v436
    %v508 = vunpack.c.l.b16 %v437
    %v509 = vunpack.c.l.b16 %v438
    %v510 = vunpack.c.l.b16 %v439
    %v511 = vunpack.c.l.b16 %v440
    %v512 = vunpack.c.l.b16 %v441
    %v513 = vunpack.c.l.b16 %v442
    %v514 = vunpack.c.l.b16 %v443
    %v515 = vunpack.c.l.b16 %v444
    %v516 = vunpack.c.l.b16 %v445
    %v517 = vunpack.c.l.b16 %v446
    %v518 = vunpack.c.l.b16 %v447
    %v519 = vunpack.c.l.b16 %v448
    %v520 = vunpack.c.l.b16 %v449
    %v521 = vunpack.c.l.b16 %v450
    %v522 = vunpack.c.l.b16 %v451
    %v523 = vpack.c.b16 %v492, %v491
    %v524 = vpack.c.b16 %v494, %v493
    %v525 = vpack.c.b16 %v496, %v495
    %v526 = vpack.c.b16 %v498, %v497
    %v527 = vpack.c.b16 %v500, %v499
    %v528 = vpack.c.b16 %v502, %v501
    %v529 = vpack.c.b16 %v504, %v503
    %v530 = vpack.c.b16 %v506, %v505
    %v531 = vpack.c.b16 %v508, %v507
    %v532 = vpack.c.b16 %v510, %v509
    %v533 = vpack.c.b16 %v512, %v511
    %v534 = vpack.c.b16 %v514, %v513
    %v535 = vpack.c.b16 %v516, %v515
    %v536 = vpack.c.b16 %v518, %v517
    %v537 = vpack.c.b16 %v520, %v519
    %v538 = vpack.c.b16 %v522, %v521
    %555 = vmatprep.subr.bf16.mxu0 0
    %556 = vmatpush1.bf16.msra.mxu0 %v523
    %557 = vmatprep.subr.bf16.mxu0 0
    %558 = vmatpush1.bf16.msra.mxu0 %v524
    %559 = vmatprep.subr.bf16.mxu0 0
    %560 = vmatpush1.bf16.msra.mxu0 %v525
    %561 = vmatprep.subr.bf16.mxu0 0
    %562 = vmatpush1.bf16.msra.mxu0 %v526
    %563 = vmatprep.subr.bf16.mxu0 0
    %564 = vmatpush1.bf16.msra.mxu0 %v527
    %565 = vmatprep.subr.bf16.mxu0 0
    %566 = vmatpush1.bf16.msra.mxu0 %v528
    %567 = vmatprep.subr.bf16.mxu0 0
    %568 = vmatpush1.bf16.msra.mxu0 %v529
    %569 = vmatprep.subr.bf16.mxu0 0
    %570 = vmatpush1.bf16.msra.mxu0 %v530
    %571 = vmatprep.subr.bf16.mxu0 0
    %572 = vmatpush1.bf16.msra.mxu0 %v531
    %573 = vmatprep.subr.bf16.mxu0 0
    %574 = vmatpush1.bf16.msra.mxu0 %v532
    %575 = vmatprep.subr.bf16.mxu0 0
    %576 = vmatpush1.bf16.msra.mxu0 %v533
    %577 = vmatprep.subr.bf16.mxu0 0
    %578 = vmatpush1.bf16.msra.mxu0 %v534
    %579 = vmatprep.subr.bf16.mxu0 0
    %580 = vmatpush1.bf16.msra.mxu0 %v535
    %581 = vmatprep.subr.bf16.mxu0 0
    %582 = vmatpush1.bf16.msra.mxu0 %v536
    %583 = vmatprep.subr.bf16.mxu0 0
    %584 = vmatpush1.bf16.msra.mxu0 %v537
    %585 = vmatprep.subr.bf16.mxu0 0
    %586 = vmatpush1.bf16.msra.mxu0 %v538
    %587 = vmatprep.mubr.bf16.mxu0 %v419
    %588 = vmatmul.mubr.bf16.gmra.mrb[0].mxu0 %v418
    %v589 = vpop.f32.mrb[0].mxu0
    %v590 = vadd.f32 %v457, %v589
    %v591 = vpop.f32.mrb[0].mxu0
    %v592 = vpop.f32.mrb[0].mxu0
    %v593 = vadd.f32 %v457, %v592
    %v594 = vpop.f32.mrb[0].mxu0
    %595 = vdwg.mxu0
    %vm596 = vcmask 64512
    %597 = vst.msk [vmem:[%s7] sm:$0xff] %vm596, %v590
    %598 = vst.msk [vmem:[%s7 + $0x8] sm:$0xff] %vm596, %v593
    // Predicated region
    $region34: #{tpu_custom_call.1} parent=1 // pred_check
      _
    $region35: #{tpu_custom_call.1} parent=1 // pred_check_branch
      %600 = sbr.rel (0) target = $region37
    $region36: #{tpu_custom_call.1} parent=1 // pred_region
      _
    $region37: #{tpu_custom_call.1} parent=1 // pred_fallthru
      _
    // Predicated region
    $region38: #{tpu_custom_call.1} parent=1 // pred_check
      _
    $region39: #{tpu_custom_call.1} parent=1 // pred_check_branch
      %602 = sbr.rel (0) target = $region41
    $region40: #{tpu_custom_call.1} parent=1 // pred_region
      _
    $region41: #{tpu_custom_call.1} parent=1 // pred_fallthru
      _
    %603 = vsyncpa [#allocation3], 1

</llo_original>
